<compile_context>
chip_gen: v5e
topology: v5e:2x2
jax: 0.10.0
libtpu: 0.0.40
codegen_flags: <defaults>
</compile_context>

<pallas_src>
import functools

import jax
import jax.numpy as jnp
from jax.experimental import pallas as pl
from jax.experimental.pallas import tpu as pltpu

# Hyper-parameters consistent with the PyTorch module's forward pass.
INPUT_DIM = 32                    # total input features (knobs + workload)
WK_NUM = 8                        # workload features (last WK_NUM columns)
DIN = INPUT_DIM - WK_NUM          # knob features = 24
HIDDEN_DIM = 32
GROUP_DIM = 4
OUTPUT_DIM = 16
BATCH = 2
GH = GROUP_DIM * HIDDEN_DIM       # 128 (one full lane register width)

PARAM_ORDER = ("we", "be", "wkn", "bkn", "wq", "bq", "wk", "bk",
               "wv", "bv", "wo", "bo", "wfc", "bfc")

FUSED_ORDER = ("wx", "bx", "wkv", "bkv", "segm", "wov", "bo", "wfc", "bfc")


def _reshapenet_kernel(x_ref, wx_ref, bx_ref, wkv_ref, bkv_ref, segm_ref,
                       wov_ref, bo_ref, wfc_ref, bfc_ref, out_ref):
    """One batch tile of the ReshapeNet forward: 5 MXU matmuls, zero per-group loops."""
    cdt = wx_ref.dtype                       # matmul-operand dtype (f32 or bf16)
    x = x_ref[...]                           # (TB, INPUT_DIM), already in cdt

    # Fused x-side projection: lanes [0:128] = knob_fc pre-activation,
    # lanes [128:256] = q (embedding folded in, 1/sqrt(H) folded in).
    xproj = jnp.dot(x, wx_ref[...], preferred_element_type=jnp.float32) + bx_ref[...]   # (TB, 2*GH)
    kx = jax.nn.sigmoid(xproj[:, :GH])       # (TB, GH)   f32 elementwise (v5e-safe EUP)
    qt = xproj[:, GH:]                       # (TB, GH)   group-tiled, pre-scaled q

    # Per-group K|V via block-diagonal weights, concatenated column-wise -> one matmul.
    kv = jnp.dot(kx.astype(cdt), wkv_ref[...],
                 preferred_element_type=jnp.float32) + bkv_ref[...]                     # (TB, 2*GH)
    kg = kv[:, :GH]                          # (TB, GH)
    vg = kv[:, GH:]                          # (TB, GH)

    # Lane-dense per-group scores: segm is the 128x128 block-ones mask (segm @ expm),
    # so every lane of group g carries score_g.  Softmax over groups stays lane-dense;
    # the lane-sum over-counts by H, folded back with an exact divide (no approx recip).
    scores = jnp.dot((qt * kg).astype(cdt), segm_ref[...],
                     preferred_element_type=jnp.float32)                                # (TB, GH)
    scores = scores - jnp.max(scores, axis=-1, keepdims=True)
    e = jnp.exp(scores)
    attn = e * (jnp.float32(HIDDEN_DIM) / jnp.sum(e, axis=-1, keepdims=True))           # (TB, GH)

    # Context fold + out_proj in one (GH, H) weight: ctx @ wo == (attn*v) @ (foldm @ wo).
    act = jax.nn.sigmoid(
        jnp.dot((attn * vg).astype(cdt), wov_ref[...],
                preferred_element_type=jnp.float32) + bo_ref[...])                      # (TB, H)
    y = jnp.dot(act.astype(cdt), wfc_ref[...],
                preferred_element_type=jnp.float32) + bfc_ref[...]                      # (TB, OUT)
    out_ref[...] = y.astype(out_ref.dtype)


def init_params(key):
    """Deterministic synthetic parameters (weights pre-transposed for x @ W)."""
    ks = jax.random.split(key, 14)
    s = 0.1
    shapes = {
        "we": (WK_NUM, HIDDEN_DIM),             "be": (1, HIDDEN_DIM),
        "wkn": (DIN, GROUP_DIM * HIDDEN_DIM),   "bkn": (1, GROUP_DIM * HIDDEN_DIM),
        "wq": (HIDDEN_DIM, HIDDEN_DIM),         "bq": (1, HIDDEN_DIM),
        "wk": (HIDDEN_DIM, HIDDEN_DIM),         "bk": (1, HIDDEN_DIM),
        "wv": (HIDDEN_DIM, HIDDEN_DIM),         "bv": (1, HIDDEN_DIM),
        "wo": (HIDDEN_DIM, HIDDEN_DIM),         "bo": (1, HIDDEN_DIM),
        "wfc": (HIDDEN_DIM, OUTPUT_DIM),        "bfc": (1, OUTPUT_DIM),
    }
    return {name: s * jax.random.normal(ks[i], shapes[name], jnp.float32)
            for i, name in enumerate(PARAM_ORDER)}


def prepare_fused_params(params, matmul_dtype=jnp.float32):
    """One-time wrapper-side weight fusion (exact algebra; only dtype cast is lossy)."""
    H, G = HIDDEN_DIM, GROUP_DIM
    f32 = jnp.float32
    scale = 1.0 / jnp.sqrt(jnp.asarray(H, f32))

    # knob_fc half of the fused x projection (zero rows on the workload columns).
    wkn_pad = jnp.zeros((INPUT_DIM, GH), f32).at[:DIN, :].set(params["wkn"])

    # embedding -> q fold (no nonlinearity in between); 1/sqrt(H) folded into wq AND bq;
    # q tiled across groups so it lines up lane-for-lane with the per-group K.
    we_pad = jnp.zeros((INPUT_DIM, H), f32).at[DIN:, :].set(params["we"])
    wqt = jnp.tile(params["wq"] * scale, (1, G))            # (H, GH)
    bqt = jnp.tile(params["bq"] * scale, (1, G))            # (1, GH)
    wq_fused = we_pad @ wqt                                  # (INPUT_DIM, GH)
    bq_fused = params["be"] @ wqt + bqt                      # (1, GH)

    wx = jnp.concatenate([wkn_pad, wq_fused], axis=1)        # (INPUT_DIM, 2*GH)
    bx = jnp.concatenate([params["bkn"], bq_fused], axis=1)  # (1, 2*GH)

    # Block-diagonal K and V, concatenated column-wise -> one (GH, 2*GH) contraction.
    eye_g = jnp.eye(G, dtype=f32)
    wkv = jnp.concatenate([jnp.kron(eye_g, params["wk"]),
                           jnp.kron(eye_g, params["wv"])], axis=1)      # (GH, 2*GH)
    bkv = jnp.concatenate([jnp.tile(params["bk"], (1, G)),
                           jnp.tile(params["bv"], (1, G))], axis=1)     # (1, 2*GH)

    # Block-ones mask (== segm @ expm): lane-dense per-group score broadcast.
    grp = jnp.repeat(jnp.arange(G), H)
    segm = (grp[:, None] == grp[None, :]).astype(f32)        # (GH, GH)

    # fold_mask @ wo: context group-fold + out_proj in a single (GH, H) weight.
    feat = jnp.tile(jnp.arange(H), G)
    fold_mask = (feat[:, None] == jnp.arange(H)[None, :]).astype(f32)   # (GH, H)
    wov = fold_mask @ params["wo"]                           # (GH, H)

    md = matmul_dtype
    return {
        "wx": wx.astype(md), "bx": bx,
        "wkv": wkv.astype(md), "bkv": bkv,
        "segm": segm.astype(md),
        "wov": wov.astype(md), "bo": params["bo"],
        "wfc": params["wfc"].astype(md), "bfc": params["bfc"],
    }


def _round_up(n, m):
    return ((n + m - 1) // m) * m


def _tpu_defaults():
    """Per-generation batch-tile cap + scoped-VMEM limit (v7x has only 64 MiB VMEM)."""
    try:
        vmem_bytes = pltpu.get_tpu_info().vmem_capacity_bytes
    except Exception:
        vmem_bytes = 64 << 20                     # conservative (v7x-sized) fallback
    if vmem_bytes >= (96 << 20):                  # v5e / v6e: 128 MiB per TensorCore
        return 4096, 80 << 20
    return 2048, 48 << 20                         # v7x: 64 MiB per TensorCore


def _pick_tile(B, cap):
    """Largest multiple-of-8 tile <= cap; prefer one dividing B (no jnp.pad copy of x)."""
    cap = max(8, _round_up(min(cap, _round_up(B, 8)), 8))
    if B % 8 == 0:
        tb = cap
        while tb >= max(cap // 4, 8):
            if B % tb == 0:
                return tb, B                      # divides -> no padded copy of x
            tb -= 8
    return cap, _round_up(B, cap)


@functools.partial(jax.jit, static_argnames=("block_batch", "vmem_limit_bytes"))
def _reshapenet_forward_impl(x, fused, block_batch, vmem_limit_bytes):
    B = x.shape[0]
    md = fused["wx"].dtype
    tb, Bp = _pick_tile(B, block_batch)
    if Bp != B:
        x = jnp.pad(x, ((0, Bp - B), (0, 0)))     # only for small/ragged batches
    x = x.astype(md)                              # stream x at matmul dtype (once)

    flat = [fused[n] for n in FUSED_ORDER]
    # All fused weights/biases/masks are small 2D arrays; a constant block index keeps
    # them VMEM-resident across the whole batch grid.
    w_specs = [pl.BlockSpec(w.shape, lambda i: (0, 0)) for w in flat]

    out_pad = pl.pallas_call(
        _reshapenet_kernel,
        out_shape=jax.ShapeDtypeStruct((Bp, OUTPUT_DIM), jnp.float32),
        grid=(Bp // tb,),
        in_specs=[pl.BlockSpec((tb, INPUT_DIM), lambda i: (i, 0))] + w_specs,
        out_specs=pl.BlockSpec((tb, OUTPUT_DIM), lambda i: (i, 0)),
        compiler_params=pltpu.CompilerParams(
            dimension_semantics=("parallel",),
            vmem_limit_bytes=vmem_limit_bytes),
    )(x, *flat)
    return out_pad[:B]


def reshapenet_forward(x, fused, block_batch=None, vmem_limit_bytes=None):
    """Grid over batch tiles; tile cap / VMEM limit auto-picked per TPU generation."""
    cap_d, vmem_d = _tpu_defaults()
    return _reshapenet_forward_impl(
        x, fused,
        block_batch=int(block_batch or cap_d),
        vmem_limit_bytes=int(vmem_limit_bytes or vmem_d))


def reshapenet_ref(x, p):
    """Pure-JAX reference mirroring the PyTorch forward (for correctness check)."""
    wk_in = x[:, -WK_NUM:]
    knobs = x[:, :-WK_NUM]
    emb = wk_in @ p["we"] + p["be"]                                   # (B, H)
    kx = jax.nn.sigmoid(knobs @ p["wkn"] + p["bkn"])                  # (B, G*H)
    res = kx.reshape(-1, GROUP_DIM, HIDDEN_DIM)                       # (B, G, H)
    q = emb @ p["wq"] + p["bq"]
    k = jnp.einsum("bgh,hd->bgd", res, p["wk"]) + p["bk"]
    v = jnp.einsum("bgh,hd->bgd", res, p["wv"]) + p["bv"]
    scores = jnp.einsum("bh,bgh->bg", q, k) / jnp.sqrt(jnp.float32(HIDDEN_DIM))
    attn = jax.nn.softmax(scores, axis=-1)
    ctx = jnp.einsum("bg,bgh->bh", attn, v)
    act = jax.nn.sigmoid(ctx @ p["wo"] + p["bo"])
    return act @ p["wfc"] + p["bfc"]


if __name__ == "__main__":
    key = jax.random.PRNGKey(0)
    kx_key, kp_key, kb_key = jax.random.split(key, 3)
    params = init_params(kp_key)

    # Small-batch check (module's nominal shape), exact f32 matmul-operand path.
    x = jax.random.normal(kx_key, (BATCH, INPUT_DIM), jnp.float32)
    ref = reshapenet_ref(x, params)
    fused_f32 = prepare_fused_params(params, jnp.float32)
    out = jax.block_until_ready(reshapenet_forward(x, fused_f32))
    assert out.shape == (BATCH, OUTPUT_DIM)
    assert jnp.allclose(out, ref, atol=2e-3, rtol=2e-3)

    # Ragged-batch check (exercises tile picking + boundary padding path).
    xb = jax.random.normal(kb_key, (300, INPUT_DIM), jnp.float32)
    out_b = jax.block_until_ready(reshapenet_forward(xb, fused_f32))
    assert out_b.shape == (300, OUTPUT_DIM)
    assert jnp.allclose(out_b, reshapenet_ref(xb, params), atol=2e-3, rtol=2e-3)

    # bf16 matmul-operand path (halves streamed HBM traffic, full-rate MXU on all
    # generations); accumulation + sigmoid/softmax stay f32, so accuracy stays close.
    fused_bf16 = prepare_fused_params(params, jnp.bfloat16)
    out_bf16 = jax.block_until_ready(reshapenet_forward(x, fused_bf16))
    assert out_bf16.shape == (BATCH, OUTPUT_DIM)
    assert jnp.allclose(out_bf16, ref, atol=5e-2, rtol=5e-2)

    print("KERNEL_OK")
</pallas_src>

<mosaic_0001>
module attributes {stable_mosaic.version = 11 : i64} {
  func.func @_reshapenet_kernel(%arg0: i32, %arg1: memref<8x32xf32, #tpu.memory_space<vmem>>, %arg2: memref<32x256xf32, #tpu.memory_space<vmem>>, %arg3: memref<1x256xf32, #tpu.memory_space<vmem>>, %arg4: memref<128x256xf32, #tpu.memory_space<vmem>>, %arg5: memref<1x256xf32, #tpu.memory_space<vmem>>, %arg6: memref<128x128xf32, #tpu.memory_space<vmem>>, %arg7: memref<128x32xf32, #tpu.memory_space<vmem>>, %arg8: memref<1x32xf32, #tpu.memory_space<vmem>>, %arg9: memref<32x16xf32, #tpu.memory_space<vmem>>, %arg10: memref<1x16xf32, #tpu.memory_space<vmem>>, %arg11: memref<8x16xf32, #tpu.memory_space<vmem>>) attributes {dimension_semantics = [#tpu.dimension_semantics<parallel>], iteration_bounds = array<i64: 1>, scalar_prefetch = 0 : i64, scratch_operands = 0 : i64, tpu.core_type = #tpu.core_type<tc>, window_params = [{transform_indices = @transform_0, window_bounds = array<i64: 8, 32>}, {pipeline_mode = #tpu.pipeline_mode<synchronous>, transform_indices = @transform_1, window_bounds = array<i64: 32, 256>}, {pipeline_mode = #tpu.pipeline_mode<synchronous>, transform_indices = @transform_2, window_bounds = array<i64: 1, 256>}, {pipeline_mode = #tpu.pipeline_mode<synchronous>, transform_indices = @transform_3, window_bounds = array<i64: 128, 256>}, {pipeline_mode = #tpu.pipeline_mode<synchronous>, transform_indices = @transform_4, window_bounds = array<i64: 1, 256>}, {pipeline_mode = #tpu.pipeline_mode<synchronous>, transform_indices = @transform_5, window_bounds = array<i64: 128, 128>}, {pipeline_mode = #tpu.pipeline_mode<synchronous>, transform_indices = @transform_6, window_bounds = array<i64: 128, 32>}, {pipeline_mode = #tpu.pipeline_mode<synchronous>, transform_indices = @transform_7, window_bounds = array<i64: 1, 32>}, {pipeline_mode = #tpu.pipeline_mode<synchronous>, transform_indices = @transform_8, window_bounds = array<i64: 32, 16>}, {pipeline_mode = #tpu.pipeline_mode<synchronous>, transform_indices = @transform_9, window_bounds = array<i64: 1, 16>}, {transform_indices = @transform_10, window_bounds = array<i64: 8, 16>}]} {
    %c0 = arith.constant 0 : index
    %c0_0 = arith.constant 0 : index
    %0 = vector.load %arg1[%c0, %c0_0] : memref<8x32xf32, #tpu.memory_space<vmem>>, vector<8x32xf32>
    %c0_1 = arith.constant 0 : index
    %c0_2 = arith.constant 0 : index
    %1 = vector.load %arg2[%c0_1, %c0_2] : memref<32x256xf32, #tpu.memory_space<vmem>>, vector<32x256xf32>
    %cst = arith.constant dense<0.000000e+00> : vector<8x256xf32>
    %2 = tpu.matmul %0, %1, %cst {dimension_numbers = #tpu.dot_dimension_numbers<[1], [0], [0], [1], [0, 0, 1, 1], [], []>} : vector<8x32xf32>, vector<32x256xf32>, vector<8x256xf32> -> vector<8x256xf32>
    %c0_3 = arith.constant 0 : index
    %c0_4 = arith.constant 0 : index
    %3 = vector.load %arg3[%c0_3, %c0_4] : memref<1x256xf32, #tpu.memory_space<vmem>>, vector<1x256xf32>
    %4 = vector.broadcast %3 : vector<1x256xf32> to vector<8x256xf32>
    %5 = arith.addf %2, %4 : vector<8x256xf32>
    %6 = vector.extract_strided_slice %5 {offsets = [0, 0], sizes = [8, 128], strides = [1, 1]} : vector<8x256xf32> to vector<8x128xf32>
    %7 = arith.negf %6 : vector<8x128xf32>
    %8 = math.exp %7 : vector<8x128xf32>
    %cst_5 = arith.constant 1.000000e+00 : f32
    %9 = vector.broadcast %cst_5 : f32 to vector<8x128xf32>
    %10 = arith.addf %9, %8 : vector<8x128xf32>
    %11 = arith.divf %9, %10 : vector<8x128xf32>
    %12 = vector.extract_strided_slice %5 {offsets = [0, 128], sizes = [8, 128], strides = [1, 1]} : vector<8x256xf32> to vector<8x128xf32>
    %c0_6 = arith.constant 0 : index
    %c0_7 = arith.constant 0 : index
    %13 = vector.load %arg4[%c0_6, %c0_7] : memref<128x256xf32, #tpu.memory_space<vmem>>, vector<128x256xf32>
    %cst_8 = arith.constant dense<0.000000e+00> : vector<8x256xf32>
    %14 = tpu.matmul %11, %13, %cst_8 {dimension_numbers = #tpu.dot_dimension_numbers<[1], [0], [0], [1], [0, 0, 1, 1], [], []>} : vector<8x128xf32>, vector<128x256xf32>, vector<8x256xf32> -> vector<8x256xf32>
    %c0_9 = arith.constant 0 : index
    %c0_10 = arith.constant 0 : index
    %15 = vector.load %arg5[%c0_9, %c0_10] : memref<1x256xf32, #tpu.memory_space<vmem>>, vector<1x256xf32>
    %16 = vector.broadcast %15 : vector<1x256xf32> to vector<8x256xf32>
    %17 = arith.addf %14, %16 : vector<8x256xf32>
    %18 = vector.extract_strided_slice %17 {offsets = [0, 0], sizes = [8, 128], strides = [1, 1]} : vector<8x256xf32> to vector<8x128xf32>
    %19 = vector.extract_strided_slice %17 {offsets = [0, 128], sizes = [8, 128], strides = [1, 1]} : vector<8x256xf32> to vector<8x128xf32>
    %20 = arith.mulf %12, %18 : vector<8x128xf32>
    %c0_11 = arith.constant 0 : index
    %c0_12 = arith.constant 0 : index
    %21 = vector.load %arg6[%c0_11, %c0_12] : memref<128x128xf32, #tpu.memory_space<vmem>>, vector<128x128xf32>
    %cst_13 = arith.constant dense<0.000000e+00> : vector<8x128xf32>
    %22 = tpu.matmul %20, %21, %cst_13 {dimension_numbers = #tpu.dot_dimension_numbers<[1], [0], [0], [1], [0, 0, 1, 1], [], []>} : vector<8x128xf32>, vector<128x128xf32>, vector<8x128xf32> -> vector<8x128xf32>
    %cst_14 = arith.constant dense<0xFF800000> : vector<8xf32>
    %23 = vector.multi_reduction <maximumf>, %22, %cst_14 [1] : vector<8x128xf32> to vector<8xf32>
    %24 = vector.shape_cast %23 : vector<8xf32> to vector<8x1xf32>
    %25 = vector.broadcast %24 : vector<8x1xf32> to vector<8x128xf32>
    %26 = arith.subf %22, %25 : vector<8x128xf32>
    %27 = math.exp %26 : vector<8x128xf32>
    %cst_15 = arith.constant dense<0.000000e+00> : vector<8xf32>
    %28 = vector.multi_reduction <add>, %27, %cst_15 [1] : vector<8x128xf32> to vector<8xf32>
    %29 = vector.shape_cast %28 : vector<8xf32> to vector<8x1xf32>
    %cst_16 = arith.constant 3.200000e+01 : f32
    %30 = vector.broadcast %cst_16 : f32 to vector<8x1xf32>
    %31 = arith.divf %30, %29 : vector<8x1xf32>
    %32 = vector.broadcast %31 : vector<8x1xf32> to vector<8x128xf32>
    %33 = arith.mulf %27, %32 : vector<8x128xf32>
    %34 = arith.mulf %33, %19 : vector<8x128xf32>
    %c0_17 = arith.constant 0 : index
    %c0_18 = arith.constant 0 : index
    %35 = vector.load %arg7[%c0_17, %c0_18] : memref<128x32xf32, #tpu.memory_space<vmem>>, vector<128x32xf32>
    %cst_19 = arith.constant dense<0.000000e+00> : vector<8x32xf32>
    %36 = tpu.matmul %34, %35, %cst_19 {dimension_numbers = #tpu.dot_dimension_numbers<[1], [0], [0], [1], [0, 0, 1, 1], [], []>} : vector<8x128xf32>, vector<128x32xf32>, vector<8x32xf32> -> vector<8x32xf32>
    %c0_20 = arith.constant 0 : index
    %c0_21 = arith.constant 0 : index
    %37 = vector.load %arg8[%c0_20, %c0_21] : memref<1x32xf32, #tpu.memory_space<vmem>>, vector<1x32xf32>
    %38 = vector.broadcast %37 : vector<1x32xf32> to vector<8x32xf32>
    %39 = arith.addf %36, %38 : vector<8x32xf32>
    %40 = arith.negf %39 : vector<8x32xf32>
    %41 = math.exp %40 : vector<8x32xf32>
    %cst_22 = arith.constant 1.000000e+00 : f32
    %42 = vector.broadcast %cst_22 : f32 to vector<8x32xf32>
    %43 = arith.addf %42, %41 : vector<8x32xf32>
    %44 = arith.divf %42, %43 : vector<8x32xf32>
    %c0_23 = arith.constant 0 : index
    %c0_24 = arith.constant 0 : index
    %45 = vector.load %arg9[%c0_23, %c0_24] : memref<32x16xf32, #tpu.memory_space<vmem>>, vector<32x16xf32>
    %cst_25 = arith.constant dense<0.000000e+00> : vector<8x16xf32>
    %46 = tpu.matmul %44, %45, %cst_25 {dimension_numbers = #tpu.dot_dimension_numbers<[1], [0], [0], [1], [0, 0, 1, 1], [], []>} : vector<8x32xf32>, vector<32x16xf32>, vector<8x16xf32> -> vector<8x16xf32>
    %c0_26 = arith.constant 0 : index
    %c0_27 = arith.constant 0 : index
    %47 = vector.load %arg10[%c0_26, %c0_27] : memref<1x16xf32, #tpu.memory_space<vmem>>, vector<1x16xf32>
    %48 = vector.broadcast %47 : vector<1x16xf32> to vector<8x16xf32>
    %49 = arith.addf %46, %48 : vector<8x16xf32>
    %c0_28 = arith.constant 0 : index
    %c0_29 = arith.constant 0 : index
    %50 = vector.load %arg11[%c0_28, %c0_29] : memref<8x16xf32, #tpu.memory_space<vmem>>, vector<8x16xf32>
    tpu.vector_store %arg11[%c0_28, %c0_29], %49 {strides = array<i32>} : memref<8x16xf32, #tpu.memory_space<vmem>>, vector<8x16xf32>,
    return
  }
  func.func @transform_0(%arg0: i32) -> (i32, i32) {
    %c0_i32 = arith.constant 0 : i32
    %c0_i32_0 = arith.constant 0 : i32
    return %arg0, %c0_i32 : i32, i32
  }
  func.func @transform_1(%arg0: i32) -> (i32, i32) {
    %c0_i32 = arith.constant 0 : i32
    %c0_i32_0 = arith.constant 0 : i32
    %c0_i32_1 = arith.constant 0 : i32
    return %c0_i32, %c0_i32_0 : i32, i32
  }
  func.func @transform_2(%arg0: i32) -> (i32, i32) {
    %c0_i32 = arith.constant 0 : i32
    %c0_i32_0 = arith.constant 0 : i32
    %c0_i32_1 = arith.constant 0 : i32
    return %c0_i32, %c0_i32_0 : i32, i32
  }
  func.func @transform_3(%arg0: i32) -> (i32, i32) {
    %c0_i32 = arith.constant 0 : i32
    %c0_i32_0 = arith.constant 0 : i32
    %c0_i32_1 = arith.constant 0 : i32
    return %c0_i32, %c0_i32_0 : i32, i32
  }
  func.func @transform_4(%arg0: i32) -> (i32, i32) {
    %c0_i32 = arith.constant 0 : i32
    %c0_i32_0 = arith.constant 0 : i32
    %c0_i32_1 = arith.constant 0 : i32
    return %c0_i32, %c0_i32_0 : i32, i32
  }
  func.func @transform_5(%arg0: i32) -> (i32, i32) {
    %c0_i32 = arith.constant 0 : i32
    %c0_i32_0 = arith.constant 0 : i32
    %c0_i32_1 = arith.constant 0 : i32
    return %c0_i32, %c0_i32_0 : i32, i32
  }
  func.func @transform_6(%arg0: i32) -> (i32, i32) {
    %c0_i32 = arith.constant 0 : i32
    %c0_i32_0 = arith.constant 0 : i32
    %c0_i32_1 = arith.constant 0 : i32
    return %c0_i32, %c0_i32_0 : i32, i32
  }
  func.func @transform_7(%arg0: i32) -> (i32, i32) {
    %c0_i32 = arith.constant 0 : i32
    %c0_i32_0 = arith.constant 0 : i32
    %c0_i32_1 = arith.constant 0 : i32
    return %c0_i32, %c0_i32_0 : i32, i32
  }
  func.func @transform_8(%arg0: i32) -> (i32, i32) {
    %c0_i32 = arith.constant 0 : i32
    %c0_i32_0 = arith.constant 0 : i32
    %c0_i32_1 = arith.constant 0 : i32
    return %c0_i32, %c0_i32_0 : i32, i32
  }
  func.func @transform_9(%arg0: i32) -> (i32, i32) {
    %c0_i32 = arith.constant 0 : i32
    %c0_i32_0 = arith.constant 0 : i32
    %c0_i32_1 = arith.constant 0 : i32
    return %c0_i32, %c0_i32_0 : i32, i32
  }
  func.func @transform_10(%arg0: i32) -> (i32, i32) {
    %c0_i32 = arith.constant 0 : i32
    %c0_i32_0 = arith.constant 0 : i32
    return %arg0, %c0_i32 : i32, i32
  }
}

</mosaic_0001>

<llo_original>
// kernel: _reshapenet_forward_impl.1
$region0: #{_reshapenet_forward_impl.1}
  #allocation0 [shape = 'u32[]', space=smem, size = 0x4, offset = 0x4, fixed_abs, tag = 'smem constant byte address 0x4 - core index']
  #allocation1 [shape = 'u32[72,128]{1,0:T(1,128)}', space=vmem, size = 0x9000, scoped, tag = 'internal scratch']
  %s0 = inlined_call_operand.vmem [shape: f32[8,32], index: 0, kind: input, shape index: {}]
  %s1 = inlined_call_operand.hbm [shape: f32[32,256], index: 1, kind: input, shape index: {}]
  %s2 = inlined_call_operand.vmem [shape: f32[1,256], index: 2, kind: input, shape index: {}]
  %s3 = inlined_call_operand.hbm [shape: f32[128,256], index: 3, kind: input, shape index: {}]
  %s4 = inlined_call_operand.vmem [shape: f32[1,256], index: 4, kind: input, shape index: {}]
  %s5 = inlined_call_operand.vmem [shape: f32[128,128], index: 5, kind: input, shape index: {}]
  %s6 = inlined_call_operand.vmem [shape: f32[128,32], index: 6, kind: input, shape index: {}]
  %s7 = inlined_call_operand.vmem [shape: f32[1,32], index: 7, kind: input, shape index: {}]
  %s8 = inlined_call_operand.vmem [shape: f32[32,16], index: 8, kind: input, shape index: {}]
  %s9 = inlined_call_operand.vmem [shape: f32[1,16], index: 9, kind: input, shape index: {}]
  %s10 = inlined_call_operand.vmem [shape: f32[8,16], index: 10, kind: output, shape index: {}]
  %s11 = sld [smem:[#allocation0]]
  $region58: #{_reshapenet_forward_impl.1} parent=0
    _
  %s13 = ssub.s32 1, %s11
  %s14 = scalar_select 0, %s13, %s11
  $region1: #{_reshapenet_forward_impl.1} parent=0
    #allocation2 [shape = 'u8[32768]{0}', space=vmem, size = 0x8000, scoped, tag = 'input window, operand 1, single buffered']
    #allocation3 [shape = 's32[1]{0}', space=sflag, size = 0x4, scoped, tag = 'scoped memory for _reshapenet_forward_impl.1']
    #allocation4 [shape = 'u8[131072]{0}', space=vmem, size = 0x20000, scoped, tag = 'input window, operand 3, single buffered']
    #allocation5 [shape = 's32[1]{0}', space=sflag, size = 0x4, scoped, tag = 'scoped memory for _reshapenet_forward_impl.1']
    %15 = vsyncpa [#allocation3], 0
    %16 = vsyncpa [#allocation5], 0
    // Predicated region
    $region2: #{_reshapenet_forward_impl.1} parent=1 // pred_check
      _
    $region3: #{_reshapenet_forward_impl.1} parent=1 // pred_check_branch
      %18 = sbr.rel (0) target = $region5
    $region4: #{_reshapenet_forward_impl.1} parent=1 // pred_region
      _
    $region5: #{_reshapenet_forward_impl.1} parent=1 // pred_fallthru
      _
    // Predicated region
    $region6: #{_reshapenet_forward_impl.1} parent=1 // pred_check
      _
    $region7: #{_reshapenet_forward_impl.1} parent=1 // pred_check_branch
      %20 = sbr.rel (0) target = $region9
    $region8: #{_reshapenet_forward_impl.1} parent=1 // pred_region
      %22 = vsyncadd [#allocation3], 0
      %s23 = sshll.u32 %s1, 4
      %s24 = int_to_ptr.hbm [resolvable:$true] %s23
      %s25 = sshll.u32 [#allocation2], 4
      %s26 = int_to_ptr.vmem [resolvable:$true] %s25
      %31 = dma.hbm_to_vmem [thread:$0]  %s24, 1024, %s26, [#allocation3], 256, 256, 16
    $region9: #{_reshapenet_forward_impl.1} parent=1 // pred_fallthru
      _
    // Predicated region
    $region10: #{_reshapenet_forward_impl.1} parent=1 // pred_check
      _
    $region11: #{_reshapenet_forward_impl.1} parent=1 // pred_check_branch
      %33 = sbr.rel (0) target = $region13
    $region12: #{_reshapenet_forward_impl.1} parent=1 // pred_region
      _
    $region13: #{_reshapenet_forward_impl.1} parent=1 // pred_fallthru
      _
    // Predicated region
    $region14: #{_reshapenet_forward_impl.1} parent=1 // pred_check
      _
    $region15: #{_reshapenet_forward_impl.1} parent=1 // pred_check_branch
      %35 = sbr.rel (0) target = $region17
    $region16: #{_reshapenet_forward_impl.1} parent=1 // pred_region
      %37 = vsyncadd [#allocation5], 0
      %s38 = sshll.u32 %s3, 4
      %s39 = int_to_ptr.hbm [resolvable:$true] %s38
      %s40 = sshll.u32 [#allocation4], 4
      %s41 = int_to_ptr.vmem [resolvable:$true] %s40
      %46 = dma.hbm_to_vmem [thread:$0]  %s39, 4096, %s41, [#allocation5], 256, 256, 16
    $region17: #{_reshapenet_forward_impl.1} parent=1 // pred_fallthru
      _
    // Predicated region
    $region18: #{_reshapenet_forward_impl.1} parent=1 // pred_check
      _
    $region19: #{_reshapenet_forward_impl.1} parent=1 // pred_check_branch
      %48 = sbr.rel (0) target = $region21
    $region20: #{_reshapenet_forward_impl.1} parent=1 // pred_region
      _
    $region21: #{_reshapenet_forward_impl.1} parent=1 // pred_fallthru
      _
    // Predicated region
    $region22: #{_reshapenet_forward_impl.1} parent=1 // pred_check
      _
    $region23: #{_reshapenet_forward_impl.1} parent=1 // pred_check_branch
      %50 = sbr.rel (0) target = $region25
    $region24: #{_reshapenet_forward_impl.1} parent=1 // pred_region
      _
    $region25: #{_reshapenet_forward_impl.1} parent=1 // pred_fallthru
      _
    // Predicated region
    $region26: #{_reshapenet_forward_impl.1} parent=1 // pred_check
      _
    $region27: #{_reshapenet_forward_impl.1} parent=1 // pred_check_branch
      %52 = sbr.rel (0) target = $region29
    $region28: #{_reshapenet_forward_impl.1} parent=1 // pred_region
      _
    $region29: #{_reshapenet_forward_impl.1} parent=1 // pred_fallthru
      _
    // Predicated region
    $region30: #{_reshapenet_forward_impl.1} parent=1 // pred_check
      _
    $region31: #{_reshapenet_forward_impl.1} parent=1 // pred_check_branch
      %54 = sbr.rel (0) target = $region33
    $region32: #{_reshapenet_forward_impl.1} parent=1 // pred_region
      _
    $region33: #{_reshapenet_forward_impl.1} parent=1 // pred_fallthru
      _
    // Predicated region
    $region34: #{_reshapenet_forward_impl.1} parent=1 // pred_check
      _
    $region35: #{_reshapenet_forward_impl.1} parent=1 // pred_check_branch
      %56 = sbr.rel (0) target = $region37
    $region36: #{_reshapenet_forward_impl.1} parent=1 // pred_region
      _
    $region37: #{_reshapenet_forward_impl.1} parent=1 // pred_fallthru
      _
    // Predicated region
    $region38: #{_reshapenet_forward_impl.1} parent=1 // pred_check
      _
    $region39: #{_reshapenet_forward_impl.1} parent=1 // pred_check_branch
      %58 = sbr.rel (0) target = $region41
    $region40: #{_reshapenet_forward_impl.1} parent=1 // pred_region
      _
    $region41: #{_reshapenet_forward_impl.1} parent=1 // pred_fallthru
      _
    // Predicated region
    $region42: #{_reshapenet_forward_impl.1} parent=1 // pred_check
      _
    $region43: #{_reshapenet_forward_impl.1} parent=1 // pred_check_branch
      %60 = sbr.rel (0) target = $region45
    $region44: #{_reshapenet_forward_impl.1} parent=1 // pred_region
      %62 = dma.done [#allocation3], 1024
    $region45: #{_reshapenet_forward_impl.1} parent=1 // pred_fallthru
      _
    // Predicated region
    $region46: #{_reshapenet_forward_impl.1} parent=1 // pred_check
      _
    $region47: #{_reshapenet_forward_impl.1} parent=1 // pred_check_branch
      %64 = sbr.rel (0) target = $region49
    $region48: #{_reshapenet_forward_impl.1} parent=1 // pred_region
      %66 = dma.done [#allocation5], 4096
    $region49: #{_reshapenet_forward_impl.1} parent=1 // pred_fallthru
      _
    %v67 = vld [vmem:[%s0] sm:$0xff]
    %v68 = vld [vmem:[#allocation2] sm:$0xff]
    %v69 = vld [vmem:[#allocation2 + $0x8] sm:$0xff]
    %v70 = vld [vmem:[#allocation2 + $0x10] sm:$0xff]
    %v71 = vld [vmem:[#allocation2 + $0x18] sm:$0xff]
    %v72 = vld [vmem:[#allocation2 + $0x20] sm:$0xff]
    %v73 = vld [vmem:[#allocation2 + $0x28] sm:$0xff]
    %v74 = vld [vmem:[#allocation2 + $0x30] sm:$0xff]
    %v75 = vld [vmem:[#allocation2 + $0x38] sm:$0xff]
    %v76 = vld [vmem:[%s2] sm:$0x3]
    %v78 = vperm.slane %v76, 0
    %v79 = vperm.slane %v76, 1
    %vm82 = vcmask 261120
    %v84 = vsel %vm82, %v67, 0
    %86 = vmatpush.msra.mxu0 0.0
    %87 = vmatpush.msra.mxu0 0.0
    %88 = vmatpush.msra.mxu0 0.0
    %89 = vmatpush.msra.mxu0 0.0
    %90 = vmatpush.msra.mxu0 0.0
    %91 = vmatpush.msra.mxu0 0.0
    %92 = vmatpush.msra.mxu0 0.0
    %93 = vmatpush.msra.mxu0 0.0
    %94 = vmatpush.msra.mxu0 0.0
    %95 = vmatpush.msra.mxu0 0.0
    %96 = vmatpush.msra.mxu0 0.0
    %97 = vmatpush.msra.mxu0 0.0
    %98 = vmatpush.msra.mxu0 %v74
    %99 = vmatpush.msra.mxu0 %v72
    %100 = vmatpush.msra.mxu0 %v70
    %101 = vmatpush.msra.mxu0 %v68
    %102 = vmatmul.f32.gmra.mxu0 %v84
    %v103 = vpop.f32.mrf.mxu0
    %v104 = vadd.f32 %v78, %v103
    %105 = vdwg.mxu0
    %106 = vmatpush.msra.mxu0 0.0
    %107 = vmatpush.msra.mxu0 0.0
    %108 = vmatpush.msra.mxu0 0.0
    %109 = vmatpush.msra.mxu0 0.0
    %110 = vmatpush.msra.mxu0 0.0
    %111 = vmatpush.msra.mxu0 0.0
    %112 = vmatpush.msra.mxu0 0.0
    %113 = vmatpush.msra.mxu0 0.0
    %114 = vmatpush.msra.mxu0 0.0
    %115 = vmatpush.msra.mxu0 0.0
    %116 = vmatpush.msra.mxu0 0.0
    %117 = vmatpush.msra.mxu0 0.0
    %118 = vmatpush.msra.mxu0 %v75
    %119 = vmatpush.msra.mxu0 %v73
    %120 = vmatpush.msra.mxu0 %v71
    %121 = vmatpush.msra.mxu0 %v69
    %122 = vmatmul.f32.gmra.mxu0 %v84
    %v123 = vpop.f32.mrf.mxu0
    %v124 = vadd.f32 %v79, %v123
    %125 = vdwg.mxu0
    %v126 = vxor.u32 %v104, 2147483648
    %v127 = vmul.f32 %v126, 1.442695
    %v128 = vpow.pop %v127
    %v129 = vadd.f32 %v128, 1.0
    %v130 = vrcp.pop %v129
    %v131 = vmul.f32 %v129, %v130
    %v132 = vsub.f32 1.0, %v131
    %v133 = vmul.f32 %v130, %v132
    %v134 = vadd.f32 %v130, %v133
    %vm135 = vweird.f32 %v129
    %vm136 = vweird.f32 %v130
    %vm137 = vmor %vm135, %vm136
    %v138 = vsel %vm137, %v130, %v134
    %v139 = vand.u32 2147483647, %v129
    %vm140 = vcmp.eq.f32.partialorder %v139, 8.507059e+37
    %v141 = vand.u32 %v129, 2147483648
    %v142 = vor.u32 1.1754944e-38, %v141
    %v143 = vsel %vm140, %v142, %v138
    %v144 = vmul.f32 1.0, %v143
    %v145 = vld [vmem:[#allocation4] sm:$0xff]
    %v146 = vld [vmem:[#allocation4 + $0x8] sm:$0xff]
    %v147 = vld [vmem:[#allocation4 + $0x10] sm:$0xff]
    %v148 = vld [vmem:[#allocation4 + $0x18] sm:$0xff]
    %v149 = vld [vmem:[#allocation4 + $0x20] sm:$0xff]
    %v150 = vld [vmem:[#allocation4 + $0x28] sm:$0xff]
    %v151 = vld [vmem:[#allocation4 + $0x30] sm:$0xff]
    %v152 = vld [vmem:[#allocation4 + $0x38] sm:$0xff]
    %v153 = vld [vmem:[#allocation4 + $0x40] sm:$0xff]
    %v154 = vld [vmem:[#allocation4 + $0x48] sm:$0xff]
    %v155 = vld [vmem:[#allocation4 + $0x50] sm:$0xff]
    %v156 = vld [vmem:[#allocation4 + $0x58] sm:$0xff]
    %v157 = vld [vmem:[#allocation4 + $0x60] sm:$0xff]
    %v158 = vld [vmem:[#allocation4 + $0x68] sm:$0xff]
    %v159 = vld [vmem:[#allocation4 + $0x70] sm:$0xff]
    %v160 = vld [vmem:[#allocation4 + $0x78] sm:$0xff]
    %v161 = vld [vmem:[#allocation4 + $0x80] sm:$0xff]
    %v162 = vld [vmem:[#allocation4 + $0x88] sm:$0xff]
    %v163 = vld [vmem:[#allocation4 + $0x90] sm:$0xff]
    %v164 = vld [vmem:[#allocation4 + $0x98] sm:$0xff]
    %v165 = vld [vmem:[#allocation4 + $0xa0] sm:$0xff]
    %v166 = vld [vmem:[#allocation4 + $0xa8] sm:$0xff]
    %v167 = vld [vmem:[#allocation4 + $0xb0] sm:$0xff]
    %v168 = vld [vmem:[#allocation4 + $0xb8] sm:$0xff]
    %v169 = vld [vmem:[#allocation4 + $0xc0] sm:$0xff]
    %v170 = vld [vmem:[#allocation4 + $0xc8] sm:$0xff]
    %v171 = vld [vmem:[#allocation4 + $0xd0] sm:$0xff]
    %v172 = vld [vmem:[#allocation4 + $0xd8] sm:$0xff]
    %v173 = vld [vmem:[#allocation4 + $0xe0] sm:$0xff]
    %v174 = vld [vmem:[#allocation4 + $0xe8] sm:$0xff]
    %v175 = vld [vmem:[#allocation4 + $0xf0] sm:$0xff]
    %v176 = vld [vmem:[#allocation4 + $0xf8] sm:$0xff]
    %v177 = vld [vmem:[%s4] sm:$0x3]
    %v179 = vperm.slane %v177, 0
    %v180 = vperm.slane %v177, 1
    %183 = vmatpush.msra.mxu0 %v175
    %184 = vmatpush.msra.mxu0 %v173
    %185 = vmatpush.msra.mxu0 %v171
    %186 = vmatpush.msra.mxu0 %v169
    %187 = vmatpush.msra.mxu0 %v167
    %188 = vmatpush.msra.mxu0 %v165
    %189 = vmatpush.msra.mxu0 %v163
    %190 = vmatpush.msra.mxu0 %v161
    %191 = vmatpush.msra.mxu0 %v159
    %192 = vmatpush.msra.mxu0 %v157
    %193 = vmatpush.msra.mxu0 %v155
    %194 = vmatpush.msra.mxu0 %v153
    %195 = vmatpush.msra.mxu0 %v151
    %196 = vmatpush.msra.mxu0 %v149
    %197 = vmatpush.msra.mxu0 %v147
    %198 = vmatpush.msra.mxu0 %v145
    %199 = vmatmul.f32.gmra.mxu0 %v144
    %v200 = vpop.f32.mrf.mxu0
    %v201 = vadd.f32 %v179, %v200
    %202 = vdwg.mxu0
    %203 = vmatpush.msra.mxu0 %v176
    %204 = vmatpush.msra.mxu0 %v174
    %205 = vmatpush.msra.mxu0 %v172
    %206 = vmatpush.msra.mxu0 %v170
    %207 = vmatpush.msra.mxu0 %v168
    %208 = vmatpush.msra.mxu0 %v166
    %209 = vmatpush.msra.mxu0 %v164
    %210 = vmatpush.msra.mxu0 %v162
    %211 = vmatpush.msra.mxu0 %v160
    %212 = vmatpush.msra.mxu0 %v158
    %213 = vmatpush.msra.mxu0 %v156
    %214 = vmatpush.msra.mxu0 %v154
    %215 = vmatpush.msra.mxu0 %v152
    %216 = vmatpush.msra.mxu0 %v150
    %217 = vmatpush.msra.mxu0 %v148
    %218 = vmatpush.msra.mxu0 %v146
    %219 = vmatmul.f32.gmra.mxu0 %v144
    %v220 = vpop.f32.mrf.mxu0
    %v221 = vadd.f32 %v180, %v220
    %222 = vdwg.mxu0
    %v223 = vmul.f32 %v124, %v201
    %v224 = vld [vmem:[%s5] sm:$0xff]
    %v225 = vld [vmem:[%s5 + $0x8] sm:$0xff]
    %v226 = vld [vmem:[%s5 + $0x10] sm:$0xff]
    %v227 = vld [vmem:[%s5 + $0x18] sm:$0xff]
    %v228 = vld [vmem:[%s5 + $0x20] sm:$0xff]
    %v229 = vld [vmem:[%s5 + $0x28] sm:$0xff]
    %v230 = vld [vmem:[%s5 + $0x30] sm:$0xff]
    %v231 = vld [vmem:[%s5 + $0x38] sm:$0xff]
    %v232 = vld [vmem:[%s5 + $0x40] sm:$0xff]
    %v233 = vld [vmem:[%s5 + $0x48] sm:$0xff]
    %v234 = vld [vmem:[%s5 + $0x50] sm:$0xff]
    %v235 = vld [vmem:[%s5 + $0x58] sm:$0xff]
    %v236 = vld [vmem:[%s5 + $0x60] sm:$0xff]
    %v237 = vld [vmem:[%s5 + $0x68] sm:$0xff]
    %v238 = vld [vmem:[%s5 + $0x70] sm:$0xff]
    %v239 = vld [vmem:[%s5 + $0x78] sm:$0xff]
    %240 = vmatpush.msra.mxu0 %v239
    %241 = vmatpush.msra.mxu0 %v238
    %242 = vmatpush.msra.mxu0 %v237
    %243 = vmatpush.msra.mxu0 %v236
    %244 = vmatpush.msra.mxu0 %v235
    %245 = vmatpush.msra.mxu0 %v234
    %246 = vmatpush.msra.mxu0 %v233
    %247 = vmatpush.msra.mxu0 %v232
    %248 = vmatpush.msra.mxu0 %v231
    %249 = vmatpush.msra.mxu0 %v230
    %250 = vmatpush.msra.mxu0 %v229
    %251 = vmatpush.msra.mxu0 %v228
    %252 = vmatpush.msra.mxu0 %v227
    %253 = vmatpush.msra.mxu0 %v226
    %254 = vmatpush.msra.mxu0 %v225
    %255 = vmatpush.msra.mxu0 %v224
    %256 = vmatmul.f32.gmra.mxu0 %v223
    %v257 = vpop.f32.mrf.mxu0
    %v258 = vadd.f32 0.0, %v257
    %259 = vdwg.mxu0
    %260 = vmax.xlane.f32.xlu0 %v258
    %v261 = vpop.xlane.xlu0 %260
    %v262 = vsub.f32 %v258, %v261
    %v263 = vmul.f32 %v262, 1.442695
    %v264 = vpow.pop %v263
    %265 = vadd.xlane.f32.xlu0 %v264
    %v266 = vpop.xlane.xlu0 %265
    %v267 = vrcp.pop %v266
    %v268 = vmul.f32 %v266, %v267
    %v269 = vsub.f32 1.0, %v268
    %v270 = vmul.f32 %v267, %v269
    %v271 = vadd.f32 %v267, %v270
    %vm272 = vweird.f32 %v266
    %vm273 = vweird.f32 %v267
    %vm274 = vmor %vm272, %vm273
    %v275 = vsel %vm274, %v267, %v271
    %v276 = vand.u32 2147483647, %v266
    %vm277 = vcmp.eq.f32.partialorder %v276, 8.507059e+37
    %v278 = vand.u32 %v266, 2147483648
    %v279 = vor.u32 1.1754944e-38, %v278
    %v280 = vsel %vm277, %v279, %v275
    %v281 = vmul.f32 32.0, %v280
    %v282 = vmul.f32 %v264, %v281
    %v283 = vmul.f32 %v282, %v221
    %v284 = vld [vmem:[%s6] sm:$0xff]
    %v285 = vld [vmem:[%s6 + $0x8] sm:$0xff]
    %v286 = vld [vmem:[%s6 + $0x10] sm:$0xff]
    %v287 = vld [vmem:[%s6 + $0x18] sm:$0xff]
    %v288 = vld [vmem:[%s6 + $0x20] sm:$0xff]
    %v289 = vld [vmem:[%s6 + $0x28] sm:$0xff]
    %v290 = vld [vmem:[%s6 + $0x30] sm:$0xff]
    %v291 = vld [vmem:[%s6 + $0x38] sm:$0xff]
    %v292 = vld [vmem:[%s6 + $0x40] sm:$0xff]
    %v293 = vld [vmem:[%s6 + $0x48] sm:$0xff]
    %v294 = vld [vmem:[%s6 + $0x50] sm:$0xff]
    %v295 = vld [vmem:[%s6 + $0x58] sm:$0xff]
    %v296 = vld [vmem:[%s6 + $0x60] sm:$0xff]
    %v297 = vld [vmem:[%s6 + $0x68] sm:$0xff]
    %v298 = vld [vmem:[%s6 + $0x70] sm:$0xff]
    %v299 = vld [vmem:[%s6 + $0x78] sm:$0xff]
    %v300 = vld [vmem:[%s7] sm:$0x1]
    %v302 = vperm.slane %v300, 0
    %304 = vmatpush.msra.mxu0 %v299
    %305 = vmatpush.msra.mxu0 %v298
    %306 = vmatpush.msra.mxu0 %v297
    %307 = vmatpush.msra.mxu0 %v296
    %308 = vmatpush.msra.mxu0 %v295
    %309 = vmatpush.msra.mxu0 %v294
    %310 = vmatpush.msra.mxu0 %v293
    %311 = vmatpush.msra.mxu0 %v292
    %312 = vmatpush.msra.mxu0 %v291
    %313 = vmatpush.msra.mxu0 %v290
    %314 = vmatpush.msra.mxu0 %v289
    %315 = vmatpush.msra.mxu0 %v288
    %316 = vmatpush.msra.mxu0 %v287
    %317 = vmatpush.msra.mxu0 %v286
    %318 = vmatpush.msra.mxu0 %v285
    %319 = vmatpush.msra.mxu0 %v284
    %320 = vmatmul.f32.gmra.mxu0 %v283
    %v321 = vpop.f32.mrf.mxu0
    %v322 = vadd.f32 %v302, %v321
    %323 = vdwg.mxu0
    %v324 = vxor.u32 %v322, 2147483648
    %v325 = vmul.f32 %v324, 1.442695
    %v326 = vpow.pop %v325
    %v327 = vadd.f32 %v326, 1.0
    %v328 = vrcp.pop %v327
    %v329 = vmul.f32 %v327, %v328
    %v330 = vsub.f32 1.0, %v329
    %v331 = vmul.f32 %v328, %v330
    %v332 = vadd.f32 %v328, %v331
    %vm333 = vweird.f32 %v327
    %vm334 = vweird.f32 %v328
    %vm335 = vmor %vm333, %vm334
    %v336 = vsel %vm335, %v328, %v332
    %v337 = vand.u32 2147483647, %v327
    %vm338 = vcmp.eq.f32.partialorder %v337, 8.507059e+37
    %v339 = vand.u32 %v327, 2147483648
    %v340 = vor.u32 1.1754944e-38, %v339
    %v341 = vsel %vm338, %v340, %v336
    %v342 = vmul.f32 1.0, %v341
    %v343 = vld [vmem:[%s8] sm:$0xff]
    %v344 = vld [vmem:[%s8 + $0x8] sm:$0xff]
    %v345 = vld [vmem:[%s8 + $0x10] sm:$0xff]
    %v346 = vld [vmem:[%s8 + $0x18] sm:$0xff]
    %v347 = vld [vmem:[%s9] sm:$0x1]
    %v349 = vperm.slane %v347, 0
    %v352 = vsel %vm82, %v342, 0
    %354 = vmatpush.msra.mxu0 0.0
    %355 = vmatpush.msra.mxu0 0.0
    %356 = vmatpush.msra.mxu0 0.0
    %357 = vmatpush.msra.mxu0 0.0
    %358 = vmatpush.msra.mxu0 0.0
    %359 = vmatpush.msra.mxu0 0.0
    %360 = vmatpush.msra.mxu0 0.0
    %361 = vmatpush.msra.mxu0 0.0
    %362 = vmatpush.msra.mxu0 0.0
    %363 = vmatpush.msra.mxu0 0.0
    %364 = vmatpush.msra.mxu0 0.0
    %365 = vmatpush.msra.mxu0 0.0
    %366 = vmatpush.msra.mxu0 %v346
    %367 = vmatpush.msra.mxu0 %v345
    %368 = vmatpush.msra.mxu0 %v344
    %369 = vmatpush.msra.mxu0 %v343
    %370 = vmatmul.f32.gmra.mxu0 %v352
    %v371 = vpop.f32.mrf.mxu0
    %v372 = vadd.f32 %v349, %v371
    %373 = vdwg.mxu0
    %vm374 = vcmask 130048
    %375 = vst.msk [vmem:[%s10] sm:$0xff] %vm374, %v372
    // Predicated region
    $region50: #{_reshapenet_forward_impl.1} parent=1 // pred_check
      _
    $region51: #{_reshapenet_forward_impl.1} parent=1 // pred_check_branch
      %377 = sbr.rel (0) target = $region53
    $region52: #{_reshapenet_forward_impl.1} parent=1 // pred_region
      _
    $region53: #{_reshapenet_forward_impl.1} parent=1 // pred_fallthru
      _
    // Predicated region
    $region54: #{_reshapenet_forward_impl.1} parent=1 // pred_check
      _
    $region55: #{_reshapenet_forward_impl.1} parent=1 // pred_check_branch
      %379 = sbr.rel (0) target = $region57
    $region56: #{_reshapenet_forward_impl.1} parent=1 // pred_region
      _
    $region57: #{_reshapenet_forward_impl.1} parent=1 // pred_fallthru
      _
    %380 = vsyncpa [#allocation3], 1
    %381 = vsyncpa [#allocation5], 1

</llo_original>
